<compile_context>
chip_gen: v7x
topology: tpu7x:2x2x1
jax: 0.10.0
libtpu: 0.0.40
codegen_flags: <defaults>
</compile_context>

<pallas_src>
import functools

import jax
import jax.numpy as jnp
from jax.experimental import pallas as pl
from jax.experimental.pallas import tpu as pltpu


def _joints_mse_kernel(pred_ref, gt_ref, out_ref, acc_ref, *, rows, tm, inner):
    # pred_ref / gt_ref: (tm, HW) row tile in VMEM (input dtype).
    # out_ref: (8, 128) f32 per-core partial-sum block (lane-dense store).
    # acc_ref: (tm, HW) f32 VMEM accumulator, resident across the inner axis.
    c = pl.program_id(0)  # core-split axis ("parallel")
    i = pl.program_id(1)  # row-tile axis ("arbitrary", accumulated)

    @pl.when(i == 0)
    def _():
        acc_ref[...] = jnp.zeros_like(acc_ref)

    p = pred_ref[...].astype(jnp.float32)
    g = gt_ref[...].astype(jnp.float32)
    diff = p - g
    sq = diff * diff

    # Mask rows past the end of the real data (partial last tile or a fully
    # redundant trailing tile when the row-tile count is odd).
    row_start = (c * inner + i) * tm
    local_row = jax.lax.broadcasted_iota(jnp.int32, (tm, 1), 0)
    valid = (local_row + row_start) < rows
    acc_ref[...] += jnp.where(valid, sq, 0.0)  # pure VPU adds per step

    @pl.when(i == pl.num_programs(1) - 1)
    def _():
        total = jnp.sum(acc_ref[...])  # single cross-lane reduce, once per core
        out_ref[...] = jnp.zeros(out_ref.shape, out_ref.dtype) + total


def joints_mse_loss(pred, target):
    """pred, target: (B, J, H, W) arrays (NCHW, like the PyTorch module)."""
    assert pred.shape == target.shape
    B, J, H, W = pred.shape
    rows, cols = B * J, H * W
    n_elems = rows * cols

    # Free, contiguous reshapes — no transpose, no extra HBM traffic.
    p2 = pred.reshape(rows, cols)
    t2 = target.reshape(rows, cols)

    # Row-tile size: ~2 MiB per input tile per pipeline buffer keeps
    # 2 inputs x 2 buffers + f32 accumulator under every generation's default
    # scoped VMEM limit (v5e 16 MiB, v6e/v7x 32 MiB).
    itemsize = jnp.dtype(pred.dtype).itemsize
    target_tile_bytes = 2 * 1024 * 1024
    if rows <= 8:
        tm = rows  # full second-to-last dim (no 8-divisibility requirement)
    else:
        tm = max(8, min(rows, target_tile_bytes // (cols * itemsize)))
        tm = (tm // 8) * 8
    nb = pl.cdiv(rows, tm)   # number of row tiles
    inner = pl.cdiv(nb, 2)   # row tiles handled by each core half

    def row_block(c, i):
        # Clamp so a redundant trailing tile never indexes out of bounds; its
        # contribution is masked to zero inside the kernel anyway.
        return (jnp.minimum(c * inner + i, nb - 1), 0)

    kernel = functools.partial(_joints_mse_kernel, rows=rows, tm=tm, inner=inner)

    out = pl.pallas_call(
        kernel,
        out_shape=jax.ShapeDtypeStruct((2 * 8, 128), jnp.float32),
        grid_spec=pltpu.PrefetchScalarGridSpec(
            num_scalar_prefetch=0,
            grid=(2, inner),
            in_specs=[
                pl.BlockSpec((tm, cols), row_block),
                pl.BlockSpec((tm, cols), row_block),
            ],
            out_specs=pl.BlockSpec((8, 128), lambda c, i: (c, 0)),
            scratch_shapes=[pltpu.VMEM((tm, cols), jnp.float32)],
        ),
        compiler_params=pltpu.CompilerParams(
            dimension_semantics=("parallel", "arbitrary"),
        ),
        cost_estimate=pl.CostEstimate(
            flops=3 * n_elems,
            transcendentals=0,
            bytes_accessed=(p2.size + t2.size) * itemsize + 2 * 8 * 128 * 4,
        ),
    )(p2, t2)

    total_sq = out[0, 0] + out[8, 0]  # combine per-core partials
    # (1/J) * sum_j 0.5*mean_{B,HW}(diff_j^2)  ==  0.5 * sum(diff^2) / (B*J*H*W)
    return 0.5 * total_sq / jnp.float32(n_elems)


def _reference_loss(pred, target):
    # Pure-JAX reference mirroring the PyTorch loop exactly.
    B, J, H, W = pred.shape
    pr = pred.reshape(B, J, -1).astype(jnp.float32)
    gt = target.reshape(B, J, -1).astype(jnp.float32)
    loss = 0.0
    for j in range(J):
        d = pr[:, j, :] - gt[:, j, :]
        loss += 0.5 * jnp.mean(d * d)
    return loss / J


if __name__ == "__main__":
    key = jax.random.PRNGKey(0)
    k1, k2 = jax.random.split(key)
    B, J, H, W = 2, 4, 16, 16
    pred = jax.random.normal(k1, (B, J, H, W), dtype=jnp.float32)
    target = jax.random.normal(k2, (B, J, H, W), dtype=jnp.float32)

    loss = joints_mse_loss(pred, target)
    loss = jax.block_until_ready(loss)

    ref = _reference_loss(pred, target)
    assert jnp.allclose(loss, ref, rtol=1e-5, atol=1e-6), (loss, ref)
    print("KERNEL_OK")
</pallas_src>

<mosaic_0001>
module attributes {stable_mosaic.version = 11 : i64} {
  func.func @_joints_mse_kernel(%arg0: i32, %arg1: i32, %arg2: memref<8x256xf32, #tpu.memory_space<vmem>>, %arg3: memref<8x256xf32, #tpu.memory_space<vmem>>, %arg4: memref<8x128xf32, #tpu.memory_space<vmem>>, %arg5: memref<8x256xf32, #tpu.memory_space<vmem>>) attributes {dimension_semantics = [#tpu.dimension_semantics<parallel>, #tpu.dimension_semantics<arbitrary>], iteration_bounds = array<i64: 2, 1>, scalar_prefetch = 0 : i64, scratch_operands = 1 : i64, tpu.core_type = #tpu.core_type<tc>, window_params = [{transform_indices = @transform_0, window_bounds = array<i64: 8, 256>}, {transform_indices = @transform_1, window_bounds = array<i64: 8, 256>}, {transform_indices = @transform_2, window_bounds = array<i64: 8, 128>}]} {
    %c0_i32 = arith.constant 0 : i32
    %0 = arith.cmpi eq, %arg1, %c0_i32 : i32
    %1 = arith.extui %0 : i1 to i32
    %c0_i32_0 = arith.constant 0 : i32
    %2 = arith.cmpi ne, %1, %c0_i32_0 : i32
    scf.if %2 {
      %cst_11 = arith.constant 0.000000e+00 : f32
      %25 = vector.broadcast %cst_11 : f32 to vector<8x256xf32>
      %c0_12 = arith.constant 0 : index
      %c0_13 = arith.constant 0 : index
      %26 = vector.load %arg5[%c0_12, %c0_13] : memref<8x256xf32, #tpu.memory_space<vmem>>, vector<8x256xf32>
      tpu.vector_store %arg5[%c0_12, %c0_13], %25 {strides = array<i32>} : memref<8x256xf32, #tpu.memory_space<vmem>>, vector<8x256xf32>,
    } else {
    }
    %c0 = arith.constant 0 : index
    %c0_1 = arith.constant 0 : index
    %3 = vector.load %arg2[%c0, %c0_1] : memref<8x256xf32, #tpu.memory_space<vmem>>, vector<8x256xf32>
    %c0_2 = arith.constant 0 : index
    %c0_3 = arith.constant 0 : index
    %4 = vector.load %arg3[%c0_2, %c0_3] : memref<8x256xf32, #tpu.memory_space<vmem>>, vector<8x256xf32>
    %5 = arith.subf %3, %4 : vector<8x256xf32>
    %6 = arith.mulf %5, %5 : vector<8x256xf32>
    %c1_i32 = arith.constant 1 : i32
    %7 = arith.muli %arg0, %c1_i32 : i32
    %8 = arith.addi %7, %arg1 : i32
    %c8_i32 = arith.constant 8 : i32
    %9 = arith.muli %8, %c8_i32 : i32
    %10 = tpu.iota {dimensions = array<i32: 0>} : vector<8x1xi32>
    %11 = vector.broadcast %9 : i32 to vector<8x1xi32>
    %12 = arith.addi %10, %11 : vector<8x1xi32>
    %c8_i32_4 = arith.constant 8 : i32
    %13 = vector.broadcast %c8_i32_4 : i32 to vector<8x1xi32>
    %14 = arith.cmpi slt, %12, %13 : vector<8x1xi32>
    %c0_5 = arith.constant 0 : index
    %c0_6 = arith.constant 0 : index
    %15 = vector.load %arg5[%c0_5, %c0_6] : memref<8x256xf32, #tpu.memory_space<vmem>>, vector<8x256xf32>
    %cst = arith.constant 0.000000e+00 : f32
    %16 = vector.shape_cast %14 : vector<8x1xi1> to vector<8x1xi1>
    %17 = vector.broadcast %16 : vector<8x1xi1> to vector<8x256xi1>
    %18 = vector.broadcast %cst : f32 to vector<8x256xf32>
    %19 = arith.select %17, %6, %18 : vector<8x256xi1>, vector<8x256xf32>
    %20 = arith.addf %15, %19 : vector<8x256xf32>
    %c0_7 = arith.constant 0 : index
    %c0_8 = arith.constant 0 : index
    %21 = vector.load %arg5[%c0_7, %c0_8] : memref<8x256xf32, #tpu.memory_space<vmem>>, vector<8x256xf32>
    tpu.vector_store %arg5[%c0_7, %c0_8], %20 {strides = array<i32>} : memref<8x256xf32, #tpu.memory_space<vmem>>, vector<8x256xf32>,
    %c0_i32_9 = arith.constant 0 : i32
    %22 = arith.cmpi eq, %arg1, %c0_i32_9 : i32
    %23 = arith.extui %22 : i1 to i32
    %c0_i32_10 = arith.constant 0 : i32
    %24 = arith.cmpi ne, %23, %c0_i32_10 : i32
    scf.if %24 {
      %c0_11 = arith.constant 0 : index
      %c0_12 = arith.constant 0 : index
      %25 = vector.load %arg5[%c0_11, %c0_12] : memref<8x256xf32, #tpu.memory_space<vmem>>, vector<8x256xf32>
      %26 = vector.shape_cast %25 : vector<8x256xf32> to vector<1x8x256xf32>
      %cst_13 = arith.constant dense<0.000000e+00> : vector<1xf32>
      %27 = vector.multi_reduction <add>, %26, %cst_13 [1, 2] : vector<1x8x256xf32> to vector<1xf32>
      %28 = vector.shape_cast %27 : vector<1xf32> to vector<1x1x1xf32>
      %29 = vector.extract %28[0, 0, 0] : f32 from vector<1x1x1xf32>
      %cst_14 = arith.constant 0.000000e+00 : f32
      %30 = vector.broadcast %cst_14 : f32 to vector<8x128xf32>
      %31 = vector.broadcast %29 : f32 to vector<8x128xf32>
      %32 = arith.addf %30, %31 : vector<8x128xf32>
      %c0_15 = arith.constant 0 : index
      %c0_16 = arith.constant 0 : index
      %33 = vector.load %arg4[%c0_15, %c0_16] : memref<8x128xf32, #tpu.memory_space<vmem>>, vector<8x128xf32>
      tpu.vector_store %arg4[%c0_15, %c0_16], %32 {strides = array<i32>} : memref<8x128xf32, #tpu.memory_space<vmem>>, vector<8x128xf32>,
    } else {
    }
    return
  }
  func.func @transform_0(%arg0: i32, %arg1: i32) -> (i32, i32) {
    %c1_i32 = arith.constant 1 : i32
    %0 = arith.muli %arg0, %c1_i32 : i32
    %1 = arith.addi %0, %arg1 : i32
    %c0_i32 = arith.constant 0 : i32
    %2 = arith.minsi %1, %c0_i32 : i32
    %c0_i32_0 = arith.constant 0 : i32
    %c0_i32_1 = arith.constant 0 : i32
    return %2, %c0_i32_0 : i32, i32
  }
  func.func @transform_1(%arg0: i32, %arg1: i32) -> (i32, i32) {
    %c1_i32 = arith.constant 1 : i32
    %0 = arith.muli %arg0, %c1_i32 : i32
    %1 = arith.addi %0, %arg1 : i32
    %c0_i32 = arith.constant 0 : i32
    %2 = arith.minsi %1, %c0_i32 : i32
    %c0_i32_0 = arith.constant 0 : i32
    %c0_i32_1 = arith.constant 0 : i32
    return %2, %c0_i32_0 : i32, i32
  }
  func.func @transform_2(%arg0: i32, %arg1: i32) -> (i32, i32) {
    %c0_i32 = arith.constant 0 : i32
    %c0_i32_0 = arith.constant 0 : i32
    return %arg0, %c0_i32 : i32, i32
  }
}

</mosaic_0001>

<llo_original>
// kernel: tpu_custom_call.1
$region0: #{tpu_custom_call.1}
  #allocation0 [shape = 'u32[]', space=smem, size = 0x4, offset = 0x4, fixed_abs, tag = 'smem constant byte address 0x4 - core index']
  #allocation1 [shape = 'u32[144,128]{1,0:T(1,128)}', space=vmem, size = 0x12000, scoped, tag = 'internal scratch']
  #allocation2 [shape = 'f32[8,256]{1,0:T(8,128)}', space=vmem, size = 0x2000, scoped, tag = 'scratch operand']
  %s0 = inlined_call_operand.hbm [shape: f32[8,256], index: 0, kind: input, shape index: {}]
  %s1 = inlined_call_operand.hbm [shape: f32[8,256], index: 1, kind: input, shape index: {}]
  %s2 = inlined_call_operand.hbm [shape: f32[16,128], index: 2, kind: output, shape index: {}]
  %s3 = sld [smem:[#allocation0]]
  $region57: #{tpu_custom_call.1} parent=0
    _
  %s5 = ssub.s32 1, %s3
  %s6 = scalar_select 0, %s5, %s3
  $region1: #{tpu_custom_call.1} parent=0
    #allocation3 [shape = 'u8[16384]{0}', space=vmem, size = 0x4000, scoped, tag = 'input window, operand 0']
    #allocation4 [shape = 's32[2]{0}', space=sflag, size = 0x8, scoped, tag = 'scoped memory for tpu_custom_call.1']
    #allocation5 [shape = 's32[2]{0}', space=sflag, size = 0x8, scoped, tag = 'scoped memory for tpu_custom_call.1']
    #allocation6 [shape = 'u8[16384]{0}', space=vmem, size = 0x4000, scoped, tag = 'input window, operand 1']
    #allocation7 [shape = 's32[2]{0}', space=sflag, size = 0x8, scoped, tag = 'scoped memory for tpu_custom_call.1']
    #allocation8 [shape = 'u8[8192]{0}', space=vmem, size = 0x2000, scoped, tag = 'output window, operand 0']
    %7 = vsyncpa [#allocation4], 0
    %s8 = scalar_lea.sflag [#allocation4], 1
    %9 = vsyncpa %s8, 0
    %10 = vsyncpa [#allocation7], 0
    %s11 = scalar_lea.sflag [#allocation7], 1
    %12 = vsyncpa %s11, 0
    %13 = vsyncpa [#allocation5], 0
    %s14 = scalar_lea.sflag [#allocation5], 1
    %15 = vsyncpa %s14, 0
    loop: start=0, step=1, limit=4
    $region2: #{tpu_custom_call.1} parent=1 // loop_pre_header
      _
    $region3: #{tpu_custom_call.1} parent=1 // loop_header
      %s17 = sphi 0, %s21
      %p18 = scmp.ge.s32.totalorder %s17, 4
      %s24 = sphi 0, %s36
      %s25 = sphi 0, %s32
      %s26 = sphi 0, %s24
      %s27 = sphi 0, %s25
      %s28 = sphi 0, %s26
      %s29 = sphi 0, %s27
      %s45 = sphi 0, %s47
      %s48 = sphi 0, %s45
      %s49 = sphi 0, %s48
      %s65 = sphi 0, %s49
      %s77 = sphi 0, %s79
      %s80 = sphi 0, %s77
      %s81 = sphi 0, %s80
      %s97 = sphi 0, %s81
      %s103 = sphi 0, %s105
      %s106 = sphi 0, %s103
      %s107 = sphi 0, %s106
      %s123 = sphi 0, %s107
    $region4: #{tpu_custom_call.1} parent=1 // loop_header_branch
      %20 = sbr.rel (%p18) target = $region8
    $region5: #{tpu_custom_call.1} parent=1 // loop_body
      %s22 = ssub.s32 %s17, 1
      %s23 = ssub.s32 %s17, 2
      %s30 = sadd.s32 1, %s25
      %p31 = scmp.ge.s32.totalorder %s30, 1
      %s32 = scalar_select %p31, 0, %s30
      %s33 = sadd.s32 1, %s24
      %s34 = scalar_select %p31, %s33, %s24
      %p35 = scmp.ge.s32.totalorder %s34, 2
      %s36 = scalar_select %p35, 0, %s34
      %s37 = sadd.s32 %s24, %s25
      %p38 = scmp.lt.s32.totalorder %s37, 0
      %s39 = scalar_select %p38, %s37, 0
      %s40 = sadd.s32 %s36, %s32
      %p41 = scmp.lt.s32.totalorder %s40, 0
      %s42 = scalar_select %p41, %s40, 0
      %s43 = ssub.s32 %s39, %s42
      %p44 = scmp.eq.s32.totalorder %s43, 0
      %s46 = sadd.s32 %s45, 1
      %s47 = scalar_select %p44, %s45, %s46
      %p50 = pneg %p44
      %p51 = scmp.eq.s32.totalorder %s17, 1
      %p52 = por %p50, %p51
      %p53 = scmp.ne.s32.totalorder %s45, %s48
      %p54 = scmp.eq.s32.totalorder %s17, 0
      %p55 = por %p53, %p54
      %p56 = scmp.ne.s32.totalorder %s45, %s48
      %p57 = scmp.eq.s32.totalorder %s22, 1
      %p58 = por %p56, %p57
      %p59 = scmp.ne.s32.totalorder %s48, %s49
      %p60 = scmp.eq.s32.totalorder %s22, 0
      %p61 = por %p59, %p60
      %p62 = scmp.ne.s32.totalorder %s48, %s49
      %p63 = scmp.eq.s32.totalorder %s23, 1
      %p64 = por %p62, %p63
      %p66 = scmp.ne.s32.totalorder %s49, %s65
      %p67 = scmp.eq.s32.totalorder %s23, 0
      %p68 = por %p66, %p67
      %s69 = sadd.s32 %s24, %s25
      %p70 = scmp.lt.s32.totalorder %s69, 0
      %s71 = scalar_select %p70, %s69, 0
      %s72 = sadd.s32 %s36, %s32
      %p73 = scmp.lt.s32.totalorder %s72, 0
      %s74 = scalar_select %p73, %s72, 0
      %s75 = ssub.s32 %s71, %s74
      %p76 = scmp.eq.s32.totalorder %s75, 0
      %s78 = sadd.s32 %s77, 1
      %s79 = scalar_select %p76, %s77, %s78
      %p82 = pneg %p76
      %p83 = scmp.eq.s32.totalorder %s17, 1
      %p84 = por %p82, %p83
      %p85 = scmp.ne.s32.totalorder %s77, %s80
      %p86 = scmp.eq.s32.totalorder %s17, 0
      %p87 = por %p85, %p86
      %p88 = scmp.ne.s32.totalorder %s77, %s80
      %p89 = scmp.eq.s32.totalorder %s22, 1
      %p90 = por %p88, %p89
      %p91 = scmp.ne.s32.totalorder %s80, %s81
      %p92 = scmp.eq.s32.totalorder %s22, 0
      %p93 = por %p91, %p92
      %p94 = scmp.ne.s32.totalorder %s80, %s81
      %p95 = scmp.eq.s32.totalorder %s23, 1
      %p96 = por %p94, %p95
      %p98 = scmp.ne.s32.totalorder %s81, %s97
      %p99 = scmp.eq.s32.totalorder %s23, 0
      %p100 = por %p98, %p99
      %s101 = ssub.s32 %s24, %s36
      %p102 = scmp.eq.s32.totalorder %s101, 0
      %s104 = sadd.s32 %s103, 1
      %s105 = scalar_select %p102, %s103, %s104
      %p108 = pneg %p102
      %p109 = scmp.eq.s32.totalorder %s17, 1
      %p110 = por %p108, %p109
      %p111 = scmp.ne.s32.totalorder %s103, %s106
      %p112 = scmp.eq.s32.totalorder %s17, 0
      %p113 = por %p111, %p112
      %p114 = scmp.ne.s32.totalorder %s103, %s106
      %p115 = scmp.eq.s32.totalorder %s22, 1
      %p116 = por %p114, %p115
      %p117 = scmp.ne.s32.totalorder %s106, %s107
      %p118 = scmp.eq.s32.totalorder %s22, 0
      %p119 = por %p117, %p118
      %p120 = scmp.ne.s32.totalorder %s106, %s107
      %p121 = scmp.eq.s32.totalorder %s23, 1
      %p122 = por %p120, %p121
      %p124 = scmp.ne.s32.totalorder %s107, %s123
      %p125 = scmp.eq.s32.totalorder %s23, 0
      %p126 = por %p124, %p125
      %p127 = scmp.le.s32.totalorder 1, %s17
      %p128 = scmp.lt.s32.totalorder %s17, 3
      %p129 = pnand %p127, %p128
      %p130 = pneg %p129
      // Predicated region
      $region9: #{tpu_custom_call.1} parent=5 // pred_check
        _
      $region10: #{tpu_custom_call.1} parent=5 // pred_check_branch
        %132 = sbr.rel (%p129) target = $region12
      $region11: #{tpu_custom_call.1} parent=5 // pred_region
        %s133 = ssub.s32 %s17, 1
      $region12: #{tpu_custom_call.1} parent=5 // pred_fallthru
        _
      %p134 = scmp.lt.s32.totalorder %s17, 2
      // Predicated region
      $region13: #{tpu_custom_call.1} parent=5 // pred_check
        %p135 = pneg %p134
      $region14: #{tpu_custom_call.1} parent=5 // pred_check_branch
        %137 = sbr.rel (%p135) target = $region16
      $region15: #{tpu_custom_call.1} parent=5 // pred_region
        // Predicated region
        $region17: #{tpu_custom_call.1} parent=15 // pred_check
          %p138 = pneg %p55
        $region18: #{tpu_custom_call.1} parent=15 // pred_check_branch
          %140 = sbr.rel (%p138) target = $region20
        $region19: #{tpu_custom_call.1} parent=15 // pred_region
          %s141 = sand.u32 %s45, 1
          %s142 = scalar_lea.sflag [#allocation4], %s141
          %s143 = sand.u32 %s45, 1
          %s144 = smul.addr %s143, 16
          %s145 = scalar_lea.vmem [#allocation3], %s144
          %s146 = sadd.s32 %s24, %s25
          %p147 = scmp.lt.s32.totalorder %s146, 0
          %s148 = scalar_select %p147, %s146, 0
          %s150 = ssub.s32 256, 256
          %151 = vsyncadd %s142, %s150
          %s152 = smul.addr %s148, 2
          %s153 = smul.addr %s152, 128
          %s154 = scalar_lea.hbm %s0, %s153
          %s156 = sshll.u32 %s145, 4
          %s157 = int_to_ptr.vmem [resolvable:$true] %s156
          %159 = dma.hbm_to_vmem [thread:$0]  %s154, 256, %s157, %s142
        $region20: #{tpu_custom_call.1} parent=15 // pred_fallthru
          _
        // Predicated region
        $region21: #{tpu_custom_call.1} parent=15 // pred_check
          %p160 = pneg %p87
        $region22: #{tpu_custom_call.1} parent=15 // pred_check_branch
          %162 = sbr.rel (%p160) target = $region24
        $region23: #{tpu_custom_call.1} parent=15 // pred_region
          %s163 = sand.u32 %s77, 1
          %s164 = scalar_lea.sflag [#allocation7], %s163
          %s165 = sand.u32 %s77, 1
          %s166 = smul.addr %s165, 16
          %s167 = scalar_lea.vmem [#allocation6], %s166
          %s168 = sadd.s32 %s24, %s25
          %p169 = scmp.lt.s32.totalorder %s168, 0
          %s170 = scalar_select %p169, %s168, 0
          %s172 = ssub.s32 256, 256
          %173 = vsyncadd %s164, %s172
          %s174 = smul.addr %s170, 2
          %s175 = smul.addr %s174, 128
          %s176 = scalar_lea.hbm %s1, %s175
          %s178 = sshll.u32 %s167, 4
          %s179 = int_to_ptr.vmem [resolvable:$true] %s178
          %181 = dma.hbm_to_vmem [thread:$0]  %s176, 256, %s179, %s164
        $region24: #{tpu_custom_call.1} parent=15 // pred_fallthru
          _
      $region16: #{tpu_custom_call.1} parent=5 // pred_fallthru
        _
      %p182 = scmp.le.s32.totalorder 1, %s17
      %p183 = scmp.lt.s32.totalorder %s17, 3
      %p184 = pnand %p182, %p183
      %p185 = pneg %p184
      // Predicated region
      $region25: #{tpu_custom_call.1} parent=5 // pred_check
        _
      $region26: #{tpu_custom_call.1} parent=5 // pred_check_branch
        %187 = sbr.rel (%p184) target = $region28
      $region27: #{tpu_custom_call.1} parent=5 // pred_region
        %s188 = ssub.s32 %s17, 1
        %s189 = sand.u32 %s48, 1
        %s190 = scalar_lea.sflag [#allocation4], %s189
        %s191 = sand.u32 %s48, 1
        %s192 = smul.addr %s191, 16
        %s193 = scalar_lea.vmem [#allocation3], %s192
        // Predicated region
        $region29: #{tpu_custom_call.1} parent=27 // pred_check
          %p194 = pneg %p61
        $region30: #{tpu_custom_call.1} parent=27 // pred_check_branch
          %196 = sbr.rel (%p194) target = $region32
        $region31: #{tpu_custom_call.1} parent=27 // pred_region
          %197 = dma.done %s190, 256
        $region32: #{tpu_custom_call.1} parent=27 // pred_fallthru
          _
        %s198 = sand.u32 %s80, 1
        %s199 = scalar_lea.sflag [#allocation7], %s198
        %s200 = sand.u32 %s80, 1
        %s201 = smul.addr %s200, 16
        %s202 = scalar_lea.vmem [#allocation6], %s201
        // Predicated region
        $region33: #{tpu_custom_call.1} parent=27 // pred_check
          %p203 = pneg %p93
        $region34: #{tpu_custom_call.1} parent=27 // pred_check_branch
          %205 = sbr.rel (%p203) target = $region36
        $region35: #{tpu_custom_call.1} parent=27 // pred_region
          %206 = dma.done %s199, 256
        $region36: #{tpu_custom_call.1} parent=27 // pred_fallthru
          _
        %s207 = sand.u32 %s48, 1
        %s208 = scalar_lea.sflag [#allocation4], %s207
        %s209 = sand.u32 %s48, 1
        %s210 = smul.addr %s209, 16
        %s211 = scalar_lea.vmem [#allocation3], %s210
        %p212 = pneg %p61
        %p213 = pneg %p58
        %s214 = sand.u32 %s80, 1
        %s215 = scalar_lea.sflag [#allocation7], %s214
        %s216 = sand.u32 %s80, 1
        %s217 = smul.addr %s216, 16
        %s218 = scalar_lea.vmem [#allocation6], %s217
        %p219 = pneg %p93
        %p220 = pneg %p90
        %p221 = pneg %p119
        %p222 = pneg %p116
        %s223 = sand.u32 %s106, 1
        %s224 = scalar_lea.sflag [#allocation5], %s223
        %s225 = sand.u32 %s106, 1
        %s226 = smul.addr %s225, 8
        %s227 = scalar_lea.vmem [#allocation8], %s226
        %s228 = sadd.s32 %s26, %s27
        %p229 = scmp.lt.s32.totalorder %s228, 0
        %s230 = scalar_select %p229, %s228, 0
        %s231 = sadd.s32 %s26, %s27
        %p232 = scmp.lt.s32.totalorder %s231, 0
        %s233 = scalar_select %p232, %s231, 0
        %p234 = scmp.eq.s32.totalorder %s27, 0
        // Predicated region
        $region37: #{tpu_custom_call.1} parent=27 // pred_check
          %p235 = pneg %p234
        $region38: #{tpu_custom_call.1} parent=27 // pred_check_branch
          %237 = sbr.rel (%p235) target = $region40
        $region39: #{tpu_custom_call.1} parent=27 // pred_region
          %238 = vst [vmem:[#allocation2] sm:$0xff] 0.0
          %239 = vst [vmem:[#allocation2 + $0x8] sm:$0xff] 0.0
        $region40: #{tpu_custom_call.1} parent=27 // pred_fallthru
          _
        %v240 = vld [vmem:[%s193] sm:$0xff]
        %v241 = vld [vmem:[%s193 + $0x8] sm:$0xff]
        %v242 = vld [vmem:[%s202] sm:$0xff]
        %v243 = vld [vmem:[%s202 + $0x8] sm:$0xff]
        %v244 = vsub.f32 %v240, %v242
        %v245 = vsub.f32 %v241, %v243
        %v246 = vmul.f32 %v244, %v244
        %v247 = vmul.f32 %v245, %v245
        %s248 = sadd.s32 %s26, %s27
        %s249 = smul.u32 %s248, 8
        %v250 = vlaneseq
        %v251 = vshrl.u32 %v250, 7
        %v252 = vstv %s249
        %v253 = vadd.s32 %v251, %v252
        %vm254 = vcmp.lt.s32.totalorder %v253, 8
        %v255 = vld [vmem:[#allocation2] sm:$0xff]
        %v256 = vld [vmem:[#allocation2 + $0x8] sm:$0xff]
        %v257 = vsel %vm254, 1, 0
        %vm258 = vcmp.eq.s32.totalorder %v257, 1
        %v259 = vsel %vm258, %v246, 0.0
        %v260 = vsel %vm258, %v247, 0.0
        %v261 = vadd.f32 %v255, %v259
        %v262 = vadd.f32 %v256, %v260
        %263 = vst [vmem:[#allocation2] sm:$0xff] %v261
        %264 = vst [vmem:[#allocation2 + $0x8] sm:$0xff] %v262
        // Predicated region
        $region41: #{tpu_custom_call.1} parent=27 // pred_check
          %p265 = pneg %p234
        $region42: #{tpu_custom_call.1} parent=27 // pred_check_branch
          %267 = sbr.rel (%p265) target = $region44
        $region43: #{tpu_custom_call.1} parent=27 // pred_region
          %v268 = vld [vmem:[#allocation2] sm:$0xff]
          %v269 = vld [vmem:[#allocation2 + $0x8] sm:$0xff]
          %v270 = vadd.f32 %v268, %v269
          %271 = vadd.xlane.f32.xlu0 %v270
          %v272 = vpop.xlane.xlu0 %271
          %v273 = vrot.slane %v272, 4
          %v274 = vadd.f32 %v272, %v273
          %v275 = vrot.slane %v274, 2
          %v276 = vadd.f32 %v274, %v275
          %v277 = vrot.slane %v276, 1
          %v278 = vadd.f32 %v276, %v277
          %s279 = vtos %v278
          %v280 = vstv %s279
          %v281 = vadd.f32 %v280, 0.0
          %282 = vst [vmem:[%s227] sm:$0xff] %v281
        $region44: #{tpu_custom_call.1} parent=27 // pred_fallthru
          _
        %s283 = sand.u32 %s106, 1
        %s284 = scalar_lea.sflag [#allocation5], %s283
        %s285 = sand.u32 %s106, 1
        %s286 = smul.addr %s285, 8
        %s287 = scalar_lea.vmem [#allocation8], %s286
        // Predicated region
        $region45: #{tpu_custom_call.1} parent=27 // pred_check
          %p288 = pneg %p116
        $region46: #{tpu_custom_call.1} parent=27 // pred_check_branch
          %290 = sbr.rel (%p288) target = $region48
        $region47: #{tpu_custom_call.1} parent=27 // pred_region
          %s292 = ssub.s32 128, 128
          %293 = vsyncadd %s284, %s292
          %s294 = smul.addr %s26, 128
          %s295 = scalar_lea.hbm %s2, %s294
          %s297 = sshll.u32 %s287, 4
          %s298 = int_to_ptr.vmem [resolvable:$true] %s297
          %300 = dma.vmem_to_hbm [thread:$0]  %s298, 128, %s295, %s284
        $region48: #{tpu_custom_call.1} parent=27 // pred_fallthru
          _
      $region28: #{tpu_custom_call.1} parent=5 // pred_fallthru
        _
      %p301 = scmp.le.s32.totalorder 2, %s17
      // Predicated region
      $region49: #{tpu_custom_call.1} parent=5 // pred_check
        %p302 = pneg %p301
      $region50: #{tpu_custom_call.1} parent=5 // pred_check_branch
        %304 = sbr.rel (%p302) target = $region52
      $region51: #{tpu_custom_call.1} parent=5 // pred_region
        %s305 = ssub.s32 %s17, 2
        // Predicated region
        $region53: #{tpu_custom_call.1} parent=51 // pred_check
          %p306 = pneg %p122
        $region54: #{tpu_custom_call.1} parent=51 // pred_check_branch
          %308 = sbr.rel (%p306) target = $region56
        $region55: #{tpu_custom_call.1} parent=51 // pred_region
          %s309 = sand.u32 %s107, 1
          %s310 = scalar_lea.sflag [#allocation5], %s309
          %s311 = sand.u32 %s107, 1
          %s312 = smul.addr %s311, 8
          %s313 = scalar_lea.vmem [#allocation8], %s312
          %314 = dma.done %s310, 128
        $region56: #{tpu_custom_call.1} parent=51 // pred_fallthru
          _
      $region52: #{tpu_custom_call.1} parent=5 // pred_fallthru
        _
    $region6: #{tpu_custom_call.1} parent=1 // loop_footer
      %s21 = sadd.s32 1, %s17
    $region7: #{tpu_custom_call.1} parent=1 // loop_footer_branch
      %16 = sbr.rel target = $region3
    $region8: #{tpu_custom_call.1} parent=1 // loop_exit
      _
    %315 = vsyncpa [#allocation4], 1
    %s316 = scalar_lea.sflag [#allocation4], 1
    %317 = vsyncpa %s316, 1
    %318 = vsyncpa [#allocation7], 1
    %s319 = scalar_lea.sflag [#allocation7], 1
    %320 = vsyncpa %s319, 1
    %321 = vsyncpa [#allocation5], 1
    %s322 = scalar_lea.sflag [#allocation5], 1
    %323 = vsyncpa %s322, 1

</llo_original>
